<compile_context>
chip_gen: v7x
topology: tpu7x:2x2x1
jax: 0.10.0
libtpu: 0.0.40
codegen_flags: <defaults>
</compile_context>

<pallas_src>
import jax
import jax.numpy as jnp
from jax.experimental import pallas as pl
from jax.experimental.pallas import tpu as pltpu


def _reverse_ce_kernel(x_ref, t_ref, w_ref, per_ref):
    x = x_ref[...].astype(jnp.float32)          # (TILE_N, C) logits (cast in-kernel)
    t = t_ref[...]                              # (TILE_N, 1) int32 labels
    w = w_ref[...].astype(jnp.float32)          # (1, C) class weights
    tn, c = x.shape

    # Numerically stable logsumexp along classes.
    m = jnp.max(x, axis=1, keepdims=True)                                   # (TILE_N, 1)
    lse = m + jnp.log(jnp.sum(jnp.exp(x - m), axis=1, keepdims=True))       # (TILE_N, 1)
    row_sum = jnp.sum(x, axis=1, keepdims=True)                             # (TILE_N, 1)

    # Build the target mask once; reuse it for both the x[t] and w[t] gathers.
    cls = jax.lax.broadcasted_iota(jnp.int32, (tn, c), 1)
    mask = cls == t                                                          # (TILE_N, C)
    x_t = jnp.sum(jnp.where(mask, x, 0.0), axis=1, keepdims=True)            # (TILE_N, 1)
    w_t = jnp.sum(jnp.where(mask, w, 0.0), axis=1, keepdims=True)            # (TILE_N, 1)

    # per-sample: logp[t] - sum_c(logp) == x[t] - sum_c(x) + (C-1)*lse
    per_ref[...] = (x_t - row_sum + jnp.float32(c - 1) * lse) * w_t


def reverse_ce(logits, target, weights=None, max_tile_n=512):
    """logits: (N, C) float (any float dtype); target: (N,) int; weights: optional (C,)."""
    logits = jnp.asarray(logits)
    n, c = logits.shape
    t = jnp.asarray(target).astype(jnp.int32).reshape(n, 1)
    if weights is None:
        # PyTorch skips the multiply when weights is None; ones are equivalent.
        w = jnp.ones((1, c), jnp.float32)
    else:
        w = jnp.asarray(weights, jnp.float32).reshape(1, c)

    # Tile sizing: multiple of 8 sublanes, capped by a conservative VMEM budget
    # (covers double-buffered native-dtype input + in-kernel f32 working copies)
    # so the tile fits even on v7x's smaller VMEM.
    vmem_budget = 20 * 1024 * 1024
    per_row_bytes = max(1, c) * 4 * 6
    tile_n = min(max_tile_n, max(8, vmem_budget // per_row_bytes), ((n + 7) // 8) * 8)
    tile_n = max(8, (tile_n // 8) * 8)

    n_pad = pl.cdiv(n, tile_n) * tile_n
    if n_pad != n:
        logits = jnp.pad(logits, ((0, n_pad - n), (0, 0)))
        t = jnp.pad(t, ((0, n_pad - n), (0, 0)))

    per = pl.pallas_call(
        _reverse_ce_kernel,
        out_shape=jax.ShapeDtypeStruct((n_pad, 1), jnp.float32),
        grid=(n_pad // tile_n,),
        in_specs=[
            pl.BlockSpec((tile_n, c), lambda i: (i, 0)),   # logits tile
            pl.BlockSpec((tile_n, 1), lambda i: (i, 0)),   # targets tile
            pl.BlockSpec((1, c), lambda i: (0, 0)),        # class weights (broadcast)
        ],
        out_specs=pl.BlockSpec((tile_n, 1), lambda i: (i, 0)),
        compiler_params=pltpu.CompilerParams(
            dimension_semantics=("parallel",),
            vmem_limit_bytes=32 * 1024 * 1024,
        ),
    )(logits, t, w)

    return jnp.sum(per[:n, 0]) / jnp.float32((c - 1) * n)


def reverse_ce_reference(logits, target, weights=None):
    n, c = logits.shape
    logp = jax.nn.log_softmax(jnp.asarray(logits, jnp.float32), axis=1)
    one_hot = jax.nn.one_hot(target, c, dtype=jnp.float32)
    per = jnp.sum(one_hot * logp - logp, axis=1)
    if weights is not None:
        per = per * jnp.asarray(weights, jnp.float32)[target]
    return jnp.sum(per) / ((c - 1) * n)


if __name__ == "__main__":
    key = jax.random.PRNGKey(0)
    k1, k2, k3, k4 = jax.random.split(key, 4)

    # Case 1: small batch with class weights (matches the module's __init__ weights arg).
    N, C = 8, 4
    logits = jax.random.normal(k1, (N, C), dtype=jnp.float32)
    target = jax.random.randint(k2, (N,), 0, C, dtype=jnp.int32)
    class_weights = jnp.array([1.0, 0.5, 2.0, 1.5], dtype=jnp.float32)

    loss = jax.block_until_ready(reverse_ce(logits, target, class_weights))
    ref = reverse_ce_reference(logits, target, class_weights)
    assert jnp.allclose(loss, ref, rtol=1e-5, atol=1e-5), (loss, ref)

    # Case 2: weights=None path, multi-tile grid with row padding (N=37, tile=16).
    N2, C2 = 37, 6
    logits2 = jax.random.normal(k3, (N2, C2), dtype=jnp.float32)
    target2 = jax.random.randint(k4, (N2,), 0, C2, dtype=jnp.int32)

    loss2 = jax.block_until_ready(reverse_ce(logits2, target2, None, max_tile_n=16))
    ref2 = reverse_ce_reference(logits2, target2, None)
    assert jnp.allclose(loss2, ref2, rtol=1e-5, atol=1e-5), (loss2, ref2)

    print("KERNEL_OK")
</pallas_src>

<mosaic_0001>
module attributes {stable_mosaic.version = 11 : i64} {
  func.func @_reverse_ce_kernel(%arg0: i32, %arg1: memref<8x4xf32, #tpu.memory_space<vmem>>, %arg2: memref<8x1xi32, #tpu.memory_space<vmem>>, %arg3: memref<1x4xf32, #tpu.memory_space<vmem>>, %arg4: memref<8x1xf32, #tpu.memory_space<vmem>>) attributes {dimension_semantics = [#tpu.dimension_semantics<parallel>], iteration_bounds = array<i64: 1>, scalar_prefetch = 0 : i64, scratch_operands = 0 : i64, tpu.core_type = #tpu.core_type<tc>, window_params = [{transform_indices = @transform_0, window_bounds = array<i64: 8, 4>}, {transform_indices = @transform_1, window_bounds = array<i64: 8, 1>}, {pipeline_mode = #tpu.pipeline_mode<synchronous>, transform_indices = @transform_2, window_bounds = array<i64: 1, 4>}, {transform_indices = @transform_3, window_bounds = array<i64: 8, 1>}]} {
    %c0 = arith.constant 0 : index
    %c0_0 = arith.constant 0 : index
    %0 = vector.load %arg1[%c0, %c0_0] : memref<8x4xf32, #tpu.memory_space<vmem>>, vector<8x4xf32>
    %c0_1 = arith.constant 0 : index
    %c0_2 = arith.constant 0 : index
    %1 = vector.load %arg2[%c0_1, %c0_2] : memref<8x1xi32, #tpu.memory_space<vmem>>, vector<8x1xi32>
    %c0_3 = arith.constant 0 : index
    %c0_4 = arith.constant 0 : index
    %2 = vector.load %arg3[%c0_3, %c0_4] : memref<1x4xf32, #tpu.memory_space<vmem>>, vector<1x4xf32>
    %cst = arith.constant dense<0xFF800000> : vector<8xf32>
    %3 = vector.multi_reduction <maximumf>, %0, %cst [1] : vector<8x4xf32> to vector<8xf32>
    %4 = vector.shape_cast %3 : vector<8xf32> to vector<8x1xf32>
    %5 = vector.broadcast %4 : vector<8x1xf32> to vector<8x4xf32>
    %6 = arith.subf %0, %5 : vector<8x4xf32>
    %7 = math.exp %6 : vector<8x4xf32>
    %cst_5 = arith.constant dense<0.000000e+00> : vector<8xf32>
    %8 = vector.multi_reduction <add>, %7, %cst_5 [1] : vector<8x4xf32> to vector<8xf32>
    %9 = vector.shape_cast %8 : vector<8xf32> to vector<8x1xf32>
    %10 = math.log %9 : vector<8x1xf32>
    %11 = arith.addf %4, %10 : vector<8x1xf32>
    %cst_6 = arith.constant dense<0.000000e+00> : vector<8xf32>
    %12 = vector.multi_reduction <add>, %0, %cst_6 [1] : vector<8x4xf32> to vector<8xf32>
    %13 = vector.shape_cast %12 : vector<8xf32> to vector<8x1xf32>
    %14 = tpu.iota {dimensions = array<i32: 1>} : vector<8x4xi32>
    %15 = vector.broadcast %1 : vector<8x1xi32> to vector<8x4xi32>
    %16 = arith.cmpi eq, %14, %15 : vector<8x4xi32>
    %cst_7 = arith.constant 0.000000e+00 : f32
    %17 = vector.broadcast %cst_7 : f32 to vector<8x4xf32>
    %18 = arith.select %16, %0, %17 : vector<8x4xi1>, vector<8x4xf32>
    %cst_8 = arith.constant dense<0.000000e+00> : vector<8xf32>
    %19 = vector.multi_reduction <add>, %18, %cst_8 [1] : vector<8x4xf32> to vector<8xf32>
    %20 = vector.shape_cast %19 : vector<8xf32> to vector<8x1xf32>
    %cst_9 = arith.constant 0.000000e+00 : f32
    %21 = vector.shape_cast %2 : vector<1x4xf32> to vector<1x4xf32>
    %22 = vector.broadcast %21 : vector<1x4xf32> to vector<8x4xf32>
    %23 = vector.broadcast %cst_9 : f32 to vector<8x4xf32>
    %24 = arith.select %16, %22, %23 : vector<8x4xi1>, vector<8x4xf32>
    %cst_10 = arith.constant dense<0.000000e+00> : vector<8xf32>
    %25 = vector.multi_reduction <add>, %24, %cst_10 [1] : vector<8x4xf32> to vector<8xf32>
    %26 = vector.shape_cast %25 : vector<8xf32> to vector<8x1xf32>
    %27 = arith.subf %20, %13 : vector<8x1xf32>
    %cst_11 = arith.constant 3.000000e+00 : f32
    %28 = vector.broadcast %cst_11 : f32 to vector<8x1xf32>
    %29 = arith.mulf %28, %11 : vector<8x1xf32>
    %30 = arith.addf %27, %29 : vector<8x1xf32>
    %31 = arith.mulf %30, %26 : vector<8x1xf32>
    %c0_12 = arith.constant 0 : index
    %c0_13 = arith.constant 0 : index
    %32 = vector.load %arg4[%c0_12, %c0_13] : memref<8x1xf32, #tpu.memory_space<vmem>>, vector<8x1xf32>
    tpu.vector_store %arg4[%c0_12, %c0_13], %31 {strides = array<i32>} : memref<8x1xf32, #tpu.memory_space<vmem>>, vector<8x1xf32>,
    return
  }
  func.func @transform_0(%arg0: i32) -> (i32, i32) {
    %c0_i32 = arith.constant 0 : i32
    %c0_i32_0 = arith.constant 0 : i32
    return %arg0, %c0_i32 : i32, i32
  }
  func.func @transform_1(%arg0: i32) -> (i32, i32) {
    %c0_i32 = arith.constant 0 : i32
    %c0_i32_0 = arith.constant 0 : i32
    return %arg0, %c0_i32 : i32, i32
  }
  func.func @transform_2(%arg0: i32) -> (i32, i32) {
    %c0_i32 = arith.constant 0 : i32
    %c0_i32_0 = arith.constant 0 : i32
    %c0_i32_1 = arith.constant 0 : i32
    return %c0_i32, %c0_i32_0 : i32, i32
  }
  func.func @transform_3(%arg0: i32) -> (i32, i32) {
    %c0_i32 = arith.constant 0 : i32
    %c0_i32_0 = arith.constant 0 : i32
    return %arg0, %c0_i32 : i32, i32
  }
}

</mosaic_0001>

<llo_original>
// kernel: tpu_custom_call.1
$region0: #{tpu_custom_call.1}
  #allocation0 [shape = 'u32[]', space=smem, size = 0x4, offset = 0x4, fixed_abs, tag = 'smem constant byte address 0x4 - core index']
  #allocation1 [shape = 'u32[144,128]{1,0:T(1,128)}', space=vmem, size = 0x12000, scoped, tag = 'internal scratch']
  %s0 = inlined_call_operand.vmem [shape: f32[8,4], index: 0, kind: input, shape index: {}]
  %s1 = inlined_call_operand.vmem [shape: s32[8,1], index: 1, kind: input, shape index: {}]
  %s2 = inlined_call_operand.vmem [shape: f32[1,4], index: 2, kind: input, shape index: {}]
  %s3 = inlined_call_operand.vmem [shape: f32[8,1], index: 3, kind: output, shape index: {}]
  %s4 = sld [smem:[#allocation0]]
  $region22: #{tpu_custom_call.1} parent=0
    _
  %s6 = ssub.s32 1, %s4
  %s7 = scalar_select 0, %s6, %s4
  // Predicated region
  $region2: #{tpu_custom_call.1} parent=0 // pred_check
    _
  $region3: #{tpu_custom_call.1} parent=0 // pred_check_branch
    %9 = sbr.rel (0) target = $region5
  $region4: #{tpu_custom_call.1} parent=0 // pred_region
    _
  $region5: #{tpu_custom_call.1} parent=0 // pred_fallthru
    _
  // Predicated region
  $region6: #{tpu_custom_call.1} parent=0 // pred_check
    _
  $region7: #{tpu_custom_call.1} parent=0 // pred_check_branch
    %11 = sbr.rel (0) target = $region9
  $region8: #{tpu_custom_call.1} parent=0 // pred_region
    _
  $region9: #{tpu_custom_call.1} parent=0 // pred_fallthru
    _
  // Predicated region
  $region10: #{tpu_custom_call.1} parent=0 // pred_check
    _
  $region11: #{tpu_custom_call.1} parent=0 // pred_check_branch
    %13 = sbr.rel (0) target = $region13
  $region12: #{tpu_custom_call.1} parent=0 // pred_region
    _
  $region13: #{tpu_custom_call.1} parent=0 // pred_fallthru
    _
  %v14 = vld [vmem:[%s0] sm:$0xff]
  %v15 = vld [vmem:[%s1] sm:$0xff]
  %v16 = vld [vmem:[%s2] sm:$0x1]
  %vm17 = vcmask 31744
  %v18 = vsel %vm17, %v14, -inf
  %19 = vmax.xlane.f32.xlu0 %v18
  %v20 = vpop.xlane.xlu0 %19
  %v21 = vsub.f32 %v14, %v20
  %v22 = vmul.f32 %v21, 1.442695
  %v23 = vpow.pop %v22
  %v24 = vsel %vm17, %v23, 0.0
  %25 = vadd.xlane.f32.xlu0 %v24
  %v26 = vpop.xlane.xlu0 %25
  %v27 = vlog2.pop %v26
  %v28 = vmul.f32 %v27, 0.6931472
  %v29 = vadd.f32 %v20, %v28
  %v30 = vsel %vm17, %v14, 0.0
  %31 = vadd.xlane.f32.xlu0 %v30
  %v32 = vpop.xlane.xlu0 %31
  %v33 = vlaneseq
  %v34 = vand.u32 %v33, 127
  %35 = vset.pattern.permute.xlu0 0
  %36 = vperm.xlu0 %35, %v15
  %v37 = vpop.permute.xlu0 %36
  %vm38 = vcmp.eq.s32.totalorder %v34, %v37
  %v39 = vsel %vm38, %v14, 0.0
  %v40 = vsel %vm17, %v39, 0.0
  %41 = vadd.xlane.f32.xlu0 %v40
  %v42 = vpop.xlane.xlu0 %41
  %v44 = vlaneseq
  %v45 = vshrl.u32 %v44, 7
  %v46 = vsub.s32 0, %v45
  %v47 = vrot.slane %v16, %v46
  %v49 = vsel %vm38, %v47, 0.0
  %v50 = vsel %vm17, %v49, 0.0
  %51 = vadd.xlane.f32.xlu0 %v50
  %v52 = vpop.xlane.xlu0 %51
  %v53 = vsub.f32 %v42, %v32
  %v54 = vmul.f32 %v29, 3.0
  %v55 = vadd.f32 %v53, %v54
  %v56 = vmul.f32 %v55, %v52
  %vm57 = vcmask 7168
  %58 = vst.msk [vmem:[%s3] sm:$0xff] %vm57, %v56
  // Predicated region
  $region14: #{tpu_custom_call.1} parent=0 // pred_check
    _
  $region15: #{tpu_custom_call.1} parent=0 // pred_check_branch
    %60 = sbr.rel (0) target = $region17
  $region16: #{tpu_custom_call.1} parent=0 // pred_region
    _
  $region17: #{tpu_custom_call.1} parent=0 // pred_fallthru
    _
  // Predicated region
  $region18: #{tpu_custom_call.1} parent=0 // pred_check
    _
  $region19: #{tpu_custom_call.1} parent=0 // pred_check_branch
    %62 = sbr.rel (0) target = $region21
  $region20: #{tpu_custom_call.1} parent=0 // pred_region
    _
  $region21: #{tpu_custom_call.1} parent=0 // pred_fallthru
    _

</llo_original>
